<compile_context>
chip_gen: v5e
topology: v5e:2x2
jax: 0.10.0
libtpu: 0.0.40
codegen_flags: <defaults>
</compile_context>

<pallas_src>
import functools

import jax
import jax.numpy as jnp
from jax.experimental import pallas as pl
from jax.experimental.pallas import tpu as pltpu

# ---------------- model configuration (small, self-consistent) ----------------
N_DENSE = 2
N_SPARSE = 3
EMBED_DIM = 10
FEAT_SIZES = [10, 8, 12]                       # vocab size per sparse feature
INPUT_DIM = N_DENSE + EMBED_DIM * N_SPARSE     # 32
# The PyTorch module requires dnn_hidden_units[0] == input_dim for the
# combination Linear's shape to be consistent (cross output keeps dim INPUT_DIM).
DNN_HIDDEN = [INPUT_DIM, 16]                   # dnn_hidden_units
CROSS_LAYERS = 2                               # layer_num
BATCH = 8


def _round_up(n, m):
    return ((n + m - 1) // m) * m


# ------------------------------- Pallas kernel --------------------------------
def dcn_kernel(x_ref, wc_ref, bc_ref, w1_ref, b1_ref, w2_ref, b2_ref,
               wcc_ref, wcd_ref, bcomb_ref, out_ref):
    # One transpose so the batch tile lives on the lane axis; every matmul is
    # then W^T @ act^T on the MXU and the (1, TB) output block is lane-dense.
    x0t = jnp.transpose(x_ref[...], (1, 0))                          # (D, TB)

    # ---- Cross network: x_{l+1} = x0 * (w_l . x_l) + b_l + x_l (transposed) ----
    xlt = x0t
    for l in range(CROSS_LAYERS):                                    # static unroll
        w_row = wc_ref[l:l + 1, :]                                   # (1, D)
        b_col = bc_ref[l * INPUT_DIM:(l + 1) * INPUT_DIM, :]         # (D, 1)
        xw = jnp.dot(w_row, xlt, preferred_element_type=jnp.float32)  # (1, TB)
        xlt = x0t * xw + b_col + xlt

    # ---- Deep network: Linear+ReLU, Linear+ReLU (transposed form) ----
    ht = jnp.dot(w1_ref[...], x0t, preferred_element_type=jnp.float32) + b1_ref[...]
    ht = jnp.maximum(ht, 0.0)                                        # (H0, TB)
    ht = jnp.dot(w2_ref[...], ht, preferred_element_type=jnp.float32) + b2_ref[...]
    ht = jnp.maximum(ht, 0.0)                                        # (H1, TB)

    # ---- Combination Linear split across the concat boundary + sigmoid ----
    logit = (jnp.dot(wcc_ref[...], xlt, preferred_element_type=jnp.float32)
             + jnp.dot(wcd_ref[...], ht, preferred_element_type=jnp.float32)
             + bcomb_ref[...])                                       # (1, TB)
    out_ref[...] = jax.nn.sigmoid(logit)                             # lane-dense


def dcn_pallas(x, params, *, max_tile=512):
    """x: (B, INPUT_DIM) float32 already embedded/concatenated -> (B, 1)."""
    assert max_tile % 128 == 0, "multi-tile batch tiles must be 128-aligned"
    B = x.shape[0]
    D = INPUT_DIM
    if B <= max_tile:
        tb = _round_up(B, 8)          # single tile: block == full (padded) array
    else:
        tb = max_tile                 # multi-tile: multiple of (8, 128)
    b_pad = _round_up(B, tb)
    if b_pad != B:
        x = jnp.pad(x, ((0, b_pad - B), (0, 0)))
    grid = (pl.cdiv(b_pad, tb),)

    # Tiny weights are pre-transposed / reshaped host-side (fused by XLA) so the
    # kernel never relayouts them.
    wc = params["wc"]                                     # (L, D)
    bc = params["bc"].reshape(CROSS_LAYERS * D, 1)        # (L*D, 1) stacked columns
    w1t = params["w1"].T                                  # (H0, D)
    b1t = params["b1"].T                                  # (H0, 1)
    w2t = params["w2"].T                                  # (H1, H0)
    b2t = params["b2"].T                                  # (H1, 1)
    wcct = params["wcomb"][:D, :].T                       # (1, D)   cross half
    wcdt = params["wcomb"][D:, :].T                       # (1, H1)  deep half
    bcomb = params["bcomb"]                               # (1, 1)

    def _resident(arr):
        # Full-shape block + constant index map: DMA'd once, stays resident in
        # VMEM across all batch tiles (block index never changes).
        return pl.BlockSpec(arr.shape, lambda i: (0, 0))

    out = pl.pallas_call(
        dcn_kernel,
        out_shape=jax.ShapeDtypeStruct((1, b_pad), jnp.float32),
        grid=grid,
        in_specs=[pl.BlockSpec((tb, D), lambda i: (i, 0)),     # batch tile of x
                  _resident(wc), _resident(bc),
                  _resident(w1t), _resident(b1t),
                  _resident(w2t), _resident(b2t),
                  _resident(wcct), _resident(wcdt), _resident(bcomb)],
        out_specs=pl.BlockSpec((1, tb), lambda i: (0, i)),     # lane-dense output
        compiler_params=pltpu.CompilerParams(
            dimension_semantics=("parallel",)),                # v7x: batch over 2 TCs
    )(x, wc, bc, w1t, b1t, w2t, b2t, wcct, wcdt, bcomb)
    return out[0, :B].reshape(B, 1)


# ------------------------------ glue (plain JAX) -------------------------------
def embed_and_concat(x_raw, emb_tables):
    # TODO(synk): for production-scale vocabularies, move this gather into the
    # kernel with PrefetchScalarGridSpec (ids as scalar prefetch + per-tile DMA
    # gather) instead of materializing the full (B, D) embedded tensor in HBM.
    dense = x_raw[:, :N_DENSE].astype(jnp.float32)
    sparse = x_raw[:, N_DENSE:].astype(jnp.int32)
    embeds = [emb_tables[i][sparse[:, i]] for i in range(N_SPARSE)]
    return jnp.concatenate([dense] + embeds, axis=-1)          # (B, INPUT_DIM)


@functools.partial(jax.jit, static_argnames=("max_tile",))
def dcn_forward(x_raw, params, max_tile=512):
    x = embed_and_concat(x_raw, params["emb"])
    return dcn_pallas(x, params, max_tile=max_tile)


# ----------------------------- pure-JAX reference ------------------------------
def dcn_reference(x_raw, params):
    x0 = embed_and_concat(x_raw, params["emb"])
    xl = x0
    for i in range(CROSS_LAYERS):
        xw = jnp.sum(xl * params["wc"][i][None, :], axis=-1, keepdims=True)
        xl = x0 * xw + params["bc"][i][None, :] + xl
    h = jnp.maximum(x0 @ params["w1"] + params["b1"], 0.0)
    h = jnp.maximum(h @ params["w2"] + params["b2"], 0.0)
    comb = jnp.concatenate([xl, h], axis=-1)
    return jax.nn.sigmoid(comb @ params["wcomb"] + params["bcomb"])


# ---------------------------------- params -------------------------------------
def init_params(key):
    ks = jax.random.split(key, 16)
    H0, H1 = DNN_HIDDEN
    return {
        "emb": [0.1 * jax.random.normal(ks[i], (FEAT_SIZES[i], EMBED_DIM), jnp.float32)
                for i in range(N_SPARSE)],
        "wc": 0.1 * jax.random.normal(ks[4], (CROSS_LAYERS, INPUT_DIM), jnp.float32),
        "bc": 0.1 * jax.random.normal(ks[5], (CROSS_LAYERS, INPUT_DIM), jnp.float32),
        "w1": 0.1 * jax.random.normal(ks[6], (INPUT_DIM, H0), jnp.float32),
        "b1": 0.1 * jax.random.normal(ks[7], (1, H0), jnp.float32),
        "w2": 0.1 * jax.random.normal(ks[8], (H0, H1), jnp.float32),
        "b2": 0.1 * jax.random.normal(ks[9], (1, H1), jnp.float32),
        "wcomb": 0.1 * jax.random.normal(ks[10], (INPUT_DIM + H1, 1), jnp.float32),
        "bcomb": 0.1 * jax.random.normal(ks[11], (1, 1), jnp.float32),
    }


def _make_raw(k_dense, k_sparse, batch):
    # raw input: first N_DENSE columns are dense floats, remaining N_SPARSE
    # columns are integer category ids stored as floats (as in the torch code).
    dense_part = jax.random.normal(k_dense, (batch, N_DENSE), jnp.float32)
    sparse_ids = jnp.stack(
        [jax.random.randint(jax.random.fold_in(k_sparse, i), (batch,), 0, FEAT_SIZES[i])
         for i in range(N_SPARSE)], axis=1).astype(jnp.float32)
    return jnp.concatenate([dense_part, sparse_ids], axis=1)   # (B, 5)


if __name__ == "__main__":
    key = jax.random.PRNGKey(0)
    kp, kd, ks = jax.random.split(key, 3)
    params = init_params(kp)

    # --- small single-tile check (B = 8) ---
    x_raw = _make_raw(kd, ks, BATCH)
    out = jax.block_until_ready(dcn_forward(x_raw, params))
    ref = dcn_reference(x_raw, params)
    assert out.shape == (BATCH, 1), out.shape
    assert jnp.allclose(out, ref, atol=2e-5, rtol=1e-4), (out, ref)

    # --- multi-tile check exercising the batch grid + padding (B=300, TB=128) ---
    x_raw2 = _make_raw(jax.random.fold_in(kd, 1), jax.random.fold_in(ks, 1), 300)
    out2 = jax.block_until_ready(dcn_forward(x_raw2, params, max_tile=128))
    ref2 = dcn_reference(x_raw2, params)
    assert out2.shape == (300, 1), out2.shape
    assert jnp.allclose(out2, ref2, atol=2e-5, rtol=1e-4)

    print("KERNEL_OK")
</pallas_src>

<mosaic_0001>
module attributes {stable_mosaic.version = 11 : i64} {
  func.func @dcn_kernel(%arg0: i32, %arg1: memref<8x32xf32, #tpu.memory_space<vmem>>, %arg2: memref<2x32xf32, #tpu.memory_space<vmem>>, %arg3: memref<64x1xf32, #tpu.memory_space<vmem>>, %arg4: memref<32x32xf32, #tpu.memory_space<vmem>>, %arg5: memref<32x1xf32, #tpu.memory_space<vmem>>, %arg6: memref<16x32xf32, #tpu.memory_space<vmem>>, %arg7: memref<16x1xf32, #tpu.memory_space<vmem>>, %arg8: memref<1x32xf32, #tpu.memory_space<vmem>>, %arg9: memref<1x16xf32, #tpu.memory_space<vmem>>, %arg10: memref<1x1xf32, #tpu.memory_space<vmem>>, %arg11: memref<1x8xf32, #tpu.memory_space<vmem>>) attributes {dimension_semantics = [#tpu.dimension_semantics<parallel>], iteration_bounds = array<i64: 1>, scalar_prefetch = 0 : i64, scratch_operands = 0 : i64, tpu.core_type = #tpu.core_type<tc>, window_params = [{transform_indices = @transform_0, window_bounds = array<i64: 8, 32>}, {pipeline_mode = #tpu.pipeline_mode<synchronous>, transform_indices = @transform_1, window_bounds = array<i64: 2, 32>}, {pipeline_mode = #tpu.pipeline_mode<synchronous>, transform_indices = @transform_2, window_bounds = array<i64: 64, 1>}, {pipeline_mode = #tpu.pipeline_mode<synchronous>, transform_indices = @transform_3, window_bounds = array<i64: 32, 32>}, {pipeline_mode = #tpu.pipeline_mode<synchronous>, transform_indices = @transform_4, window_bounds = array<i64: 32, 1>}, {pipeline_mode = #tpu.pipeline_mode<synchronous>, transform_indices = @transform_5, window_bounds = array<i64: 16, 32>}, {pipeline_mode = #tpu.pipeline_mode<synchronous>, transform_indices = @transform_6, window_bounds = array<i64: 16, 1>}, {pipeline_mode = #tpu.pipeline_mode<synchronous>, transform_indices = @transform_7, window_bounds = array<i64: 1, 32>}, {pipeline_mode = #tpu.pipeline_mode<synchronous>, transform_indices = @transform_8, window_bounds = array<i64: 1, 16>}, {pipeline_mode = #tpu.pipeline_mode<synchronous>, transform_indices = @transform_9, window_bounds = array<i64: 1, 1>}, {transform_indices = @transform_10, window_bounds = array<i64: 1, 8>}]} {
    %c0 = arith.constant 0 : index
    %c0_0 = arith.constant 0 : index
    %0 = vector.load %arg1[%c0, %c0_0] : memref<8x32xf32, #tpu.memory_space<vmem>>, vector<8x32xf32>
    %1 = tpu.transpose %0, [1, 0] : vector<8x32xf32> -> vector<32x8xf32>
    %c0_1 = arith.constant 0 : index
    %c0_2 = arith.constant 0 : index
    %2 = vector.load %arg2[%c0_1, %c0_2] : memref<2x32xf32, #tpu.memory_space<vmem>>, vector<1x32xf32>
    %c0_3 = arith.constant 0 : index
    %c0_4 = arith.constant 0 : index
    %3 = vector.load %arg3[%c0_3, %c0_4] : memref<64x1xf32, #tpu.memory_space<vmem>>, vector<32x1xf32>
    %cst = arith.constant dense<0.000000e+00> : vector<1x8xf32>
    %4 = tpu.matmul %2, %1, %cst {dimension_numbers = #tpu.dot_dimension_numbers<[1], [0], [0], [1], [0, 0, 1, 1], [], []>} : vector<1x32xf32>, vector<32x8xf32>, vector<1x8xf32> -> vector<1x8xf32>
    %5 = vector.broadcast %4 : vector<1x8xf32> to vector<32x8xf32>
    %6 = arith.mulf %1, %5 : vector<32x8xf32>
    %7 = vector.broadcast %3 : vector<32x1xf32> to vector<32x8xf32>
    %8 = arith.addf %6, %7 : vector<32x8xf32>
    %9 = arith.addf %8, %1 : vector<32x8xf32>
    %c1 = arith.constant 1 : index
    %c0_5 = arith.constant 0 : index
    %10 = vector.load %arg2[%c1, %c0_5] : memref<2x32xf32, #tpu.memory_space<vmem>>, vector<1x32xf32>
    %c32 = arith.constant 32 : index
    %c0_6 = arith.constant 0 : index
    %11 = vector.load %arg3[%c32, %c0_6] : memref<64x1xf32, #tpu.memory_space<vmem>>, vector<32x1xf32>
    %cst_7 = arith.constant dense<0.000000e+00> : vector<1x8xf32>
    %12 = tpu.matmul %10, %9, %cst_7 {dimension_numbers = #tpu.dot_dimension_numbers<[1], [0], [0], [1], [0, 0, 1, 1], [], []>} : vector<1x32xf32>, vector<32x8xf32>, vector<1x8xf32> -> vector<1x8xf32>
    %13 = vector.broadcast %12 : vector<1x8xf32> to vector<32x8xf32>
    %14 = arith.mulf %1, %13 : vector<32x8xf32>
    %15 = vector.broadcast %11 : vector<32x1xf32> to vector<32x8xf32>
    %16 = arith.addf %14, %15 : vector<32x8xf32>
    %17 = arith.addf %16, %9 : vector<32x8xf32>
    %c0_8 = arith.constant 0 : index
    %c0_9 = arith.constant 0 : index
    %18 = vector.load %arg4[%c0_8, %c0_9] : memref<32x32xf32, #tpu.memory_space<vmem>>, vector<32x32xf32>
    %cst_10 = arith.constant dense<0.000000e+00> : vector<32x8xf32>
    %19 = tpu.matmul %18, %1, %cst_10 {dimension_numbers = #tpu.dot_dimension_numbers<[1], [0], [0], [1], [0, 0, 1, 1], [], []>} : vector<32x32xf32>, vector<32x8xf32>, vector<32x8xf32> -> vector<32x8xf32>
    %c0_11 = arith.constant 0 : index
    %c0_12 = arith.constant 0 : index
    %20 = vector.load %arg5[%c0_11, %c0_12] : memref<32x1xf32, #tpu.memory_space<vmem>>, vector<32x1xf32>
    %21 = vector.broadcast %20 : vector<32x1xf32> to vector<32x8xf32>
    %22 = arith.addf %19, %21 : vector<32x8xf32>
    %cst_13 = arith.constant 0.000000e+00 : f32
    %23 = vector.broadcast %cst_13 : f32 to vector<32x8xf32>
    %24 = arith.maximumf %22, %23 : vector<32x8xf32>
    %c0_14 = arith.constant 0 : index
    %c0_15 = arith.constant 0 : index
    %25 = vector.load %arg6[%c0_14, %c0_15] : memref<16x32xf32, #tpu.memory_space<vmem>>, vector<16x32xf32>
    %cst_16 = arith.constant dense<0.000000e+00> : vector<16x8xf32>
    %26 = tpu.matmul %25, %24, %cst_16 {dimension_numbers = #tpu.dot_dimension_numbers<[1], [0], [0], [1], [0, 0, 1, 1], [], []>} : vector<16x32xf32>, vector<32x8xf32>, vector<16x8xf32> -> vector<16x8xf32>
    %c0_17 = arith.constant 0 : index
    %c0_18 = arith.constant 0 : index
    %27 = vector.load %arg7[%c0_17, %c0_18] : memref<16x1xf32, #tpu.memory_space<vmem>>, vector<16x1xf32>
    %28 = vector.broadcast %27 : vector<16x1xf32> to vector<16x8xf32>
    %29 = arith.addf %26, %28 : vector<16x8xf32>
    %cst_19 = arith.constant 0.000000e+00 : f32
    %30 = vector.broadcast %cst_19 : f32 to vector<16x8xf32>
    %31 = arith.maximumf %29, %30 : vector<16x8xf32>
    %c0_20 = arith.constant 0 : index
    %c0_21 = arith.constant 0 : index
    %32 = vector.load %arg8[%c0_20, %c0_21] : memref<1x32xf32, #tpu.memory_space<vmem>>, vector<1x32xf32>
    %cst_22 = arith.constant dense<0.000000e+00> : vector<1x8xf32>
    %33 = tpu.matmul %32, %17, %cst_22 {dimension_numbers = #tpu.dot_dimension_numbers<[1], [0], [0], [1], [0, 0, 1, 1], [], []>} : vector<1x32xf32>, vector<32x8xf32>, vector<1x8xf32> -> vector<1x8xf32>
    %c0_23 = arith.constant 0 : index
    %c0_24 = arith.constant 0 : index
    %34 = vector.load %arg9[%c0_23, %c0_24] : memref<1x16xf32, #tpu.memory_space<vmem>>, vector<1x16xf32>
    %cst_25 = arith.constant dense<0.000000e+00> : vector<1x8xf32>
    %35 = tpu.matmul %34, %31, %cst_25 {dimension_numbers = #tpu.dot_dimension_numbers<[1], [0], [0], [1], [0, 0, 1, 1], [], []>} : vector<1x16xf32>, vector<16x8xf32>, vector<1x8xf32> -> vector<1x8xf32>
    %36 = arith.addf %33, %35 : vector<1x8xf32>
    %c0_26 = arith.constant 0 : index
    %c0_27 = arith.constant 0 : index
    %37 = vector.load %arg10[%c0_26, %c0_27] : memref<1x1xf32, #tpu.memory_space<vmem>>, vector<1x1xf32>
    %38 = vector.broadcast %37 : vector<1x1xf32> to vector<1x8xf32>
    %39 = arith.addf %36, %38 : vector<1x8xf32>
    %40 = arith.negf %39 : vector<1x8xf32>
    %41 = math.exp %40 : vector<1x8xf32>
    %cst_28 = arith.constant 1.000000e+00 : f32
    %42 = vector.broadcast %cst_28 : f32 to vector<1x8xf32>
    %43 = arith.addf %42, %41 : vector<1x8xf32>
    %44 = arith.divf %42, %43 : vector<1x8xf32>
    %c0_29 = arith.constant 0 : index
    %c0_30 = arith.constant 0 : index
    %45 = vector.load %arg11[%c0_29, %c0_30] : memref<1x8xf32, #tpu.memory_space<vmem>>, vector<1x8xf32>
    tpu.vector_store %arg11[%c0_29, %c0_30], %44 {strides = array<i32>} : memref<1x8xf32, #tpu.memory_space<vmem>>, vector<1x8xf32>,
    return
  }
  func.func @transform_0(%arg0: i32) -> (i32, i32) {
    %c0_i32 = arith.constant 0 : i32
    %c0_i32_0 = arith.constant 0 : i32
    return %arg0, %c0_i32 : i32, i32
  }
  func.func @transform_1(%arg0: i32) -> (i32, i32) {
    %c0_i32 = arith.constant 0 : i32
    %c0_i32_0 = arith.constant 0 : i32
    %c0_i32_1 = arith.constant 0 : i32
    return %c0_i32, %c0_i32_0 : i32, i32
  }
  func.func @transform_2(%arg0: i32) -> (i32, i32) {
    %c0_i32 = arith.constant 0 : i32
    %c0_i32_0 = arith.constant 0 : i32
    %c0_i32_1 = arith.constant 0 : i32
    return %c0_i32, %c0_i32_0 : i32, i32
  }
  func.func @transform_3(%arg0: i32) -> (i32, i32) {
    %c0_i32 = arith.constant 0 : i32
    %c0_i32_0 = arith.constant 0 : i32
    %c0_i32_1 = arith.constant 0 : i32
    return %c0_i32, %c0_i32_0 : i32, i32
  }
  func.func @transform_4(%arg0: i32) -> (i32, i32) {
    %c0_i32 = arith.constant 0 : i32
    %c0_i32_0 = arith.constant 0 : i32
    %c0_i32_1 = arith.constant 0 : i32
    return %c0_i32, %c0_i32_0 : i32, i32
  }
  func.func @transform_5(%arg0: i32) -> (i32, i32) {
    %c0_i32 = arith.constant 0 : i32
    %c0_i32_0 = arith.constant 0 : i32
    %c0_i32_1 = arith.constant 0 : i32
    return %c0_i32, %c0_i32_0 : i32, i32
  }
  func.func @transform_6(%arg0: i32) -> (i32, i32) {
    %c0_i32 = arith.constant 0 : i32
    %c0_i32_0 = arith.constant 0 : i32
    %c0_i32_1 = arith.constant 0 : i32
    return %c0_i32, %c0_i32_0 : i32, i32
  }
  func.func @transform_7(%arg0: i32) -> (i32, i32) {
    %c0_i32 = arith.constant 0 : i32
    %c0_i32_0 = arith.constant 0 : i32
    %c0_i32_1 = arith.constant 0 : i32
    return %c0_i32, %c0_i32_0 : i32, i32
  }
  func.func @transform_8(%arg0: i32) -> (i32, i32) {
    %c0_i32 = arith.constant 0 : i32
    %c0_i32_0 = arith.constant 0 : i32
    %c0_i32_1 = arith.constant 0 : i32
    return %c0_i32, %c0_i32_0 : i32, i32
  }
  func.func @transform_9(%arg0: i32) -> (i32, i32) {
    %c0_i32 = arith.constant 0 : i32
    %c0_i32_0 = arith.constant 0 : i32
    %c0_i32_1 = arith.constant 0 : i32
    return %c0_i32, %c0_i32_0 : i32, i32
  }
  func.func @transform_10(%arg0: i32) -> (i32, i32) {
    %c0_i32 = arith.constant 0 : i32
    %c0_i32_0 = arith.constant 0 : i32
    return %c0_i32, %arg0 : i32, i32
  }
}

</mosaic_0001>

<llo_original>
// kernel: dcn_forward.1
$region0: #{dcn_forward.1}
  #allocation0 [shape = 'u32[]', space=smem, size = 0x4, offset = 0x4, fixed_abs, tag = 'smem constant byte address 0x4 - core index']
  #allocation1 [shape = 'u32[72,128]{1,0:T(1,128)}', space=vmem, size = 0x9000, scoped, tag = 'internal scratch']
  #allocation2 [shape = 'f32[1,1]{1,0:T(1,128)S(1)}', space=vmem, size = 0x200, scoped, tag = 'scoped memory for dcn_forward.1']
  %s0 = inlined_call_operand.vmem [shape: f32[8,32], index: 0, kind: input, shape index: {}]
  %s1 = inlined_call_operand.vmem [shape: f32[2,32], index: 1, kind: input, shape index: {}]
  %s2 = inlined_call_operand.vmem [shape: f32[64,1], index: 2, kind: input, shape index: {}]
  %s3 = inlined_call_operand.vmem [shape: f32[32,32], index: 3, kind: input, shape index: {}]
  %s4 = inlined_call_operand.vmem [shape: f32[32,1], index: 4, kind: input, shape index: {}]
  %s5 = inlined_call_operand.vmem [shape: f32[16,32], index: 5, kind: input, shape index: {}]
  %s6 = inlined_call_operand.vmem [shape: f32[16,1], index: 6, kind: input, shape index: {}]
  %s7 = inlined_call_operand.vmem [shape: f32[1,32], index: 7, kind: input, shape index: {}]
  %s8 = inlined_call_operand.vmem [shape: f32[1,16], index: 8, kind: input, shape index: {}]
  %s9 = inlined_call_operand.<no memory space> [shape: f32[1,1], index: 9, kind: input, shape index: {}]
  %s10 = inlined_call_operand.hbm [shape: f32[1,8], index: 10, kind: output, shape index: {}]
  %s11 = sld [smem:[#allocation0]]
  $region50: #{dcn_forward.1} parent=0
    _
  %s13 = ssub.s32 1, %s11
  %s14 = scalar_select 0, %s13, %s11
  %v15 = vstv %s9
  %16 = vst [vmem:[#allocation2] sm:$0x1] %v15
  $region1: #{dcn_forward.1} parent=0
    #allocation3 [shape = 'u8[512]{0}', space=vmem, size = 0x400, scoped, tag = 'output window, operand 0, single buffered']
    #allocation4 [shape = 's32[1]{0}', space=sflag, size = 0x4, scoped, tag = 'scoped memory for dcn_forward.1']
    %17 = vsyncpa [#allocation4], 0
    // Predicated region
    $region2: #{dcn_forward.1} parent=1 // pred_check
      _
    $region3: #{dcn_forward.1} parent=1 // pred_check_branch
      %19 = sbr.rel (0) target = $region5
    $region4: #{dcn_forward.1} parent=1 // pred_region
      _
    $region5: #{dcn_forward.1} parent=1 // pred_fallthru
      _
    // Predicated region
    $region6: #{dcn_forward.1} parent=1 // pred_check
      _
    $region7: #{dcn_forward.1} parent=1 // pred_check_branch
      %21 = sbr.rel (0) target = $region9
    $region8: #{dcn_forward.1} parent=1 // pred_region
      _
    $region9: #{dcn_forward.1} parent=1 // pred_fallthru
      _
    // Predicated region
    $region10: #{dcn_forward.1} parent=1 // pred_check
      _
    $region11: #{dcn_forward.1} parent=1 // pred_check_branch
      %23 = sbr.rel (0) target = $region13
    $region12: #{dcn_forward.1} parent=1 // pred_region
      _
    $region13: #{dcn_forward.1} parent=1 // pred_fallthru
      _
    // Predicated region
    $region14: #{dcn_forward.1} parent=1 // pred_check
      _
    $region15: #{dcn_forward.1} parent=1 // pred_check_branch
      %25 = sbr.rel (0) target = $region17
    $region16: #{dcn_forward.1} parent=1 // pred_region
      _
    $region17: #{dcn_forward.1} parent=1 // pred_fallthru
      _
    // Predicated region
    $region18: #{dcn_forward.1} parent=1 // pred_check
      _
    $region19: #{dcn_forward.1} parent=1 // pred_check_branch
      %27 = sbr.rel (0) target = $region21
    $region20: #{dcn_forward.1} parent=1 // pred_region
      _
    $region21: #{dcn_forward.1} parent=1 // pred_fallthru
      _
    // Predicated region
    $region22: #{dcn_forward.1} parent=1 // pred_check
      _
    $region23: #{dcn_forward.1} parent=1 // pred_check_branch
      %29 = sbr.rel (0) target = $region25
    $region24: #{dcn_forward.1} parent=1 // pred_region
      _
    $region25: #{dcn_forward.1} parent=1 // pred_fallthru
      _
    // Predicated region
    $region26: #{dcn_forward.1} parent=1 // pred_check
      _
    $region27: #{dcn_forward.1} parent=1 // pred_check_branch
      %31 = sbr.rel (0) target = $region29
    $region28: #{dcn_forward.1} parent=1 // pred_region
      _
    $region29: #{dcn_forward.1} parent=1 // pred_fallthru
      _
    // Predicated region
    $region30: #{dcn_forward.1} parent=1 // pred_check
      _
    $region31: #{dcn_forward.1} parent=1 // pred_check_branch
      %33 = sbr.rel (0) target = $region33
    $region32: #{dcn_forward.1} parent=1 // pred_region
      _
    $region33: #{dcn_forward.1} parent=1 // pred_fallthru
      _
    // Predicated region
    $region34: #{dcn_forward.1} parent=1 // pred_check
      _
    $region35: #{dcn_forward.1} parent=1 // pred_check_branch
      %35 = sbr.rel (0) target = $region37
    $region36: #{dcn_forward.1} parent=1 // pred_region
      _
    $region37: #{dcn_forward.1} parent=1 // pred_fallthru
      _
    // Predicated region
    $region38: #{dcn_forward.1} parent=1 // pred_check
      _
    $region39: #{dcn_forward.1} parent=1 // pred_check_branch
      %37 = sbr.rel (0) target = $region41
    $region40: #{dcn_forward.1} parent=1 // pred_region
      _
    $region41: #{dcn_forward.1} parent=1 // pred_fallthru
      _
    %v38 = vld [vmem:[%s0] sm:$0xff]
    %39 = vxpose.xlu0.b32.start [1/16] %v38, 128
    %40 = vxpose.xlu0.b32.cont [2/16] 0.0, 128
    %41 = vxpose.xlu0.b32.cont [3/16] 0.0, 128
    %42 = vxpose.xlu0.b32.cont [4/16] 0.0, 128
    %43 = vxpose.xlu0.b32.cont [5/16] 0.0, 128
    %44 = vxpose.xlu0.b32.cont [6/16] 0.0, 128
    %45 = vxpose.xlu0.b32.cont [7/16] 0.0, 128
    %46 = vxpose.xlu0.b32.cont [8/16] 0.0, 128
    %47 = vxpose.xlu0.b32.cont [9/16] 0.0, 128
    %48 = vxpose.xlu0.b32.cont [10/16] 0.0, 128
    %49 = vxpose.xlu0.b32.cont [11/16] 0.0, 128
    %50 = vxpose.xlu0.b32.cont [12/16] 0.0, 128
    %51 = vxpose.xlu0.b32.cont [13/16] 0.0, 128
    %52 = vxpose.xlu0.b32.cont [14/16] 0.0, 128
    %53 = vxpose.xlu0.b32.cont [15/16] 0.0, 128
    %54 = vxpose.xlu0.b32.end [16/16] 0.0, 128
    %v55 = vpop.trf.xlu0
    %v56 = vpop.trf.xlu0
    %v57 = vpop.trf.xlu0
    %v58 = vpop.trf.xlu0
    %v59 = vpop.trf.xlu0
    %v60 = vpop.trf.xlu0
    %v61 = vpop.trf.xlu0
    %v62 = vpop.trf.xlu0
    %v63 = vpop.trf.xlu0
    %v64 = vpop.trf.xlu0
    %v65 = vpop.trf.xlu0
    %v66 = vpop.trf.xlu0
    %v67 = vpop.trf.xlu0
    %v68 = vpop.trf.xlu0
    %v69 = vpop.trf.xlu0
    %v70 = vpop.trf.xlu0
    %v71 = vld [vmem:[%s1] sm:$0x1]
    %v72 = vld [vmem:[%s2] sm:$0xff]
    %v73 = vld [vmem:[%s2 + $0x8] sm:$0xff]
    %v74 = vld [vmem:[%s2 + $0x10] sm:$0xff]
    %v75 = vld [vmem:[%s2 + $0x18] sm:$0xff]
    %vm76 = vcmask 261120
    %v78 = vsel %vm76, %v71, 0
    %80 = vmatpush.msra.mxu0 0.0
    %81 = vmatpush.msra.mxu0 0.0
    %82 = vmatpush.msra.mxu0 0.0
    %83 = vmatpush.msra.mxu0 0.0
    %84 = vmatpush.msra.mxu0 0.0
    %85 = vmatpush.msra.mxu0 0.0
    %86 = vmatpush.msra.mxu0 0.0
    %87 = vmatpush.msra.mxu0 0.0
    %88 = vmatpush.msra.mxu0 0.0
    %89 = vmatpush.msra.mxu0 0.0
    %90 = vmatpush.msra.mxu0 0.0
    %91 = vmatpush.msra.mxu0 0.0
    %92 = vmatpush.msra.mxu0 %v58
    %93 = vmatpush.msra.mxu0 %v57
    %94 = vmatpush.msra.mxu0 %v56
    %95 = vmatpush.msra.mxu0 %v55
    %96 = vmatmul.f32.gmra.mxu0 %v78
    %v97 = vpop.f32.mrf.mxu0
    %v98 = vadd.f32 0.0, %v97
    %99 = vdwg.mxu0
    %v100 = vperm.slane %v98, 0
    %v101 = vmul.f32 %v55, %v100
    %v102 = vmul.f32 %v56, %v100
    %v103 = vmul.f32 %v57, %v100
    %v104 = vmul.f32 %v58, %v100
    %106 = vset.pattern.permute.xlu0 0
    %107 = vperm.xlu0 %106, %v72
    %v108 = vpop.permute.xlu0 %107
    %111 = vset.pattern.permute.xlu0 0
    %112 = vperm.xlu0 %111, %v73
    %v113 = vpop.permute.xlu0 %112
    %116 = vset.pattern.permute.xlu0 0
    %117 = vperm.xlu0 %116, %v74
    %v118 = vpop.permute.xlu0 %117
    %121 = vset.pattern.permute.xlu0 0
    %122 = vperm.xlu0 %121, %v75
    %v123 = vpop.permute.xlu0 %122
    %v125 = vadd.f32 %v101, %v108
    %v126 = vadd.f32 %v102, %v113
    %v127 = vadd.f32 %v103, %v118
    %v128 = vadd.f32 %v104, %v123
    %v129 = vadd.f32 %v125, %v55
    %v130 = vadd.f32 %v126, %v56
    %v131 = vadd.f32 %v127, %v57
    %v132 = vadd.f32 %v128, %v58
    %v133 = vld [vmem:[%s1 + $0x1] sm:$0x1]
    %v134 = vld [vmem:[%s2 + $0x20] sm:$0xff]
    %v135 = vld [vmem:[%s2 + $0x28] sm:$0xff]
    %v136 = vld [vmem:[%s2 + $0x30] sm:$0xff]
    %v137 = vld [vmem:[%s2 + $0x38] sm:$0xff]
    %v139 = vsel %vm76, %v133, 0
    %141 = vmatpush.msra.mxu0 0.0
    %142 = vmatpush.msra.mxu0 0.0
    %143 = vmatpush.msra.mxu0 0.0
    %144 = vmatpush.msra.mxu0 0.0
    %145 = vmatpush.msra.mxu0 0.0
    %146 = vmatpush.msra.mxu0 0.0
    %147 = vmatpush.msra.mxu0 0.0
    %148 = vmatpush.msra.mxu0 0.0
    %149 = vmatpush.msra.mxu0 0.0
    %150 = vmatpush.msra.mxu0 0.0
    %151 = vmatpush.msra.mxu0 0.0
    %152 = vmatpush.msra.mxu0 0.0
    %153 = vmatpush.msra.mxu0 %v132
    %154 = vmatpush.msra.mxu0 %v131
    %155 = vmatpush.msra.mxu0 %v130
    %156 = vmatpush.msra.mxu0 %v129
    %157 = vmatmul.f32.gmra.mxu0 %v139
    %v158 = vpop.f32.mrf.mxu0
    %v159 = vadd.f32 0.0, %v158
    %160 = vdwg.mxu0
    %v161 = vperm.slane %v159, 0
    %v162 = vmul.f32 %v55, %v161
    %v163 = vmul.f32 %v56, %v161
    %v164 = vmul.f32 %v57, %v161
    %v165 = vmul.f32 %v58, %v161
    %167 = vset.pattern.permute.xlu0 0
    %168 = vperm.xlu0 %167, %v134
    %v169 = vpop.permute.xlu0 %168
    %172 = vset.pattern.permute.xlu0 0
    %173 = vperm.xlu0 %172, %v135
    %v174 = vpop.permute.xlu0 %173
    %177 = vset.pattern.permute.xlu0 0
    %178 = vperm.xlu0 %177, %v136
    %v179 = vpop.permute.xlu0 %178
    %182 = vset.pattern.permute.xlu0 0
    %183 = vperm.xlu0 %182, %v137
    %v184 = vpop.permute.xlu0 %183
    %v186 = vadd.f32 %v162, %v169
    %v187 = vadd.f32 %v163, %v174
    %v188 = vadd.f32 %v164, %v179
    %v189 = vadd.f32 %v165, %v184
    %v190 = vadd.f32 %v186, %v129
    %v191 = vadd.f32 %v187, %v130
    %v192 = vadd.f32 %v188, %v131
    %v193 = vadd.f32 %v189, %v132
    %v194 = vld [vmem:[%s3] sm:$0xff]
    %v195 = vld [vmem:[%s3 + $0x8] sm:$0xff]
    %v196 = vld [vmem:[%s3 + $0x10] sm:$0xff]
    %v197 = vld [vmem:[%s3 + $0x18] sm:$0xff]
    %v198 = vld [vmem:[%s4] sm:$0xff]
    %v199 = vld [vmem:[%s4 + $0x8] sm:$0xff]
    %v200 = vld [vmem:[%s4 + $0x10] sm:$0xff]
    %v201 = vld [vmem:[%s4 + $0x18] sm:$0xff]
    %203 = vset.pattern.permute.xlu0 0
    %204 = vperm.xlu0 %203, %v198
    %v205 = vpop.permute.xlu0 %204
    %208 = vset.pattern.permute.xlu0 0
    %209 = vperm.xlu0 %208, %v199
    %v210 = vpop.permute.xlu0 %209
    %213 = vset.pattern.permute.xlu0 0
    %214 = vperm.xlu0 %213, %v200
    %v215 = vpop.permute.xlu0 %214
    %218 = vset.pattern.permute.xlu0 0
    %219 = vperm.xlu0 %218, %v201
    %v220 = vpop.permute.xlu0 %219
    %v223 = vsel %vm76, %v194, 0
    %v226 = vsel %vm76, %v195, 0
    %v229 = vsel %vm76, %v196, 0
    %v232 = vsel %vm76, %v197, 0
    %234 = vmatpush.msra.mxu0 0.0
    %235 = vmatpush.msra.mxu0 0.0
    %236 = vmatpush.msra.mxu0 0.0
    %237 = vmatpush.msra.mxu0 0.0
    %238 = vmatpush.msra.mxu0 0.0
    %239 = vmatpush.msra.mxu0 0.0
    %240 = vmatpush.msra.mxu0 0.0
    %241 = vmatpush.msra.mxu0 0.0
    %242 = vmatpush.msra.mxu0 0.0
    %243 = vmatpush.msra.mxu0 0.0
    %244 = vmatpush.msra.mxu0 0.0
    %245 = vmatpush.msra.mxu0 0.0
    %246 = vmatpush.msra.mxu0 %v58
    %247 = vmatpush.msra.mxu0 %v57
    %248 = vmatpush.msra.mxu0 %v56
    %249 = vmatpush.msra.mxu0 %v55
    %250 = vmatmul.f32.gmra.mxu0 %v223
    %v251 = vpop.f32.mrf.mxu0
    %v252 = vadd.f32 %v205, %v251
    %253 = vmatmul.f32.gmra.mxu0 %v226
    %v254 = vpop.f32.mrf.mxu0
    %v255 = vadd.f32 %v210, %v254
    %256 = vmatmul.f32.gmra.mxu0 %v229
    %v257 = vpop.f32.mrf.mxu0
    %v258 = vadd.f32 %v215, %v257
    %259 = vmatmul.f32.gmra.mxu0 %v232
    %v260 = vpop.f32.mrf.mxu0
    %v261 = vadd.f32 %v220, %v260
    %262 = vdwg.mxu0
    %v263 = vmax.f32 %v252, 0.0
    %v264 = vmax.f32 %v255, 0.0
    %v265 = vmax.f32 %v258, 0.0
    %v266 = vmax.f32 %v261, 0.0
    %v267 = vld [vmem:[%s5] sm:$0xff]
    %v268 = vld [vmem:[%s5 + $0x8] sm:$0xff]
    %v269 = vld [vmem:[%s6] sm:$0xff]
    %v270 = vld [vmem:[%s6 + $0x8] sm:$0xff]
    %272 = vset.pattern.permute.xlu0 0
    %273 = vperm.xlu0 %272, %v269
    %v274 = vpop.permute.xlu0 %273
    %277 = vset.pattern.permute.xlu0 0
    %278 = vperm.xlu0 %277, %v270
    %v279 = vpop.permute.xlu0 %278
    %v282 = vsel %vm76, %v267, 0
    %v285 = vsel %vm76, %v268, 0
    %287 = vmatpush.msra.mxu0 0.0
    %288 = vmatpush.msra.mxu0 0.0
    %289 = vmatpush.msra.mxu0 0.0
    %290 = vmatpush.msra.mxu0 0.0
    %291 = vmatpush.msra.mxu0 0.0
    %292 = vmatpush.msra.mxu0 0.0
    %293 = vmatpush.msra.mxu0 0.0
    %294 = vmatpush.msra.mxu0 0.0
    %295 = vmatpush.msra.mxu0 0.0
    %296 = vmatpush.msra.mxu0 0.0
    %297 = vmatpush.msra.mxu0 0.0
    %298 = vmatpush.msra.mxu0 0.0
    %299 = vmatpush.msra.mxu0 %v266
    %300 = vmatpush.msra.mxu0 %v265
    %301 = vmatpush.msra.mxu0 %v264
    %302 = vmatpush.msra.mxu0 %v263
    %303 = vmatmul.f32.gmra.mxu0 %v282
    %v304 = vpop.f32.mrf.mxu0
    %v305 = vadd.f32 %v274, %v304
    %306 = vmatmul.f32.gmra.mxu0 %v285
    %v307 = vpop.f32.mrf.mxu0
    %v308 = vadd.f32 %v279, %v307
    %309 = vdwg.mxu0
    %v310 = vmax.f32 %v305, 0.0
    %v311 = vmax.f32 %v308, 0.0
    %v312 = vld [vmem:[%s7] sm:$0x1]
    %v313 = vld [vmem:[%s8] sm:$0x1]
    %vm314 = vcmask 130048
    %v316 = vsel %vm314, %v313, 0
    %318 = vmatpush.msra.mxu0 0.0
    %319 = vmatpush.msra.mxu0 0.0
    %320 = vmatpush.msra.mxu0 0.0
    %321 = vmatpush.msra.mxu0 0.0
    %322 = vmatpush.msra.mxu0 0.0
    %323 = vmatpush.msra.mxu0 0.0
    %324 = vmatpush.msra.mxu0 0.0
    %325 = vmatpush.msra.mxu0 0.0
    %326 = vmatpush.msra.mxu0 0.0
    %327 = vmatpush.msra.mxu0 0.0
    %328 = vmatpush.msra.mxu0 0.0
    %329 = vmatpush.msra.mxu0 0.0
    %330 = vmatpush.msra.mxu0 0.0
    %331 = vmatpush.msra.mxu0 0.0
    %332 = vmatpush.msra.mxu0 %v311
    %333 = vmatpush.msra.mxu0 %v310
    %334 = vmatmul.f32.gmra.mxu0 %v316
    %v335 = vpop.f32.mrf.mxu0
    %v336 = vadd.f32 0.0, %v335
    %337 = vdwg.mxu0
    %v339 = vsel %vm76, %v312, 0
    %341 = vmatpush.msra.mxu0 0.0
    %342 = vmatpush.msra.mxu0 0.0
    %343 = vmatpush.msra.mxu0 0.0
    %344 = vmatpush.msra.mxu0 0.0
    %345 = vmatpush.msra.mxu0 0.0
    %346 = vmatpush.msra.mxu0 0.0
    %347 = vmatpush.msra.mxu0 0.0
    %348 = vmatpush.msra.mxu0 0.0
    %349 = vmatpush.msra.mxu0 0.0
    %350 = vmatpush.msra.mxu0 0.0
    %351 = vmatpush.msra.mxu0 0.0
    %352 = vmatpush.msra.mxu0 0.0
    %353 = vmatpush.msra.mxu0 %v193
    %354 = vmatpush.msra.mxu0 %v192
    %355 = vmatpush.msra.mxu0 %v191
    %356 = vmatpush.msra.mxu0 %v190
    %357 = vmatmul.f32.gmra.mxu0 %v339
    %v358 = vpop.f32.mrf.mxu0
    %v359 = vadd.f32 %v336, %v358
    %360 = vdwg.mxu0
    %v361 = vld [vmem:[#allocation2] sm:$0x1]
    %363 = vset.pattern.permute.xlu0 0
    %364 = vperm.xlu0 %363, %v361
    %v365 = vpop.permute.xlu0 %364
    %v367 = vperm.slane %v365, 0
    %v368 = vadd.f32 %v359, %v367
    %v369 = vxor.u32 %v368, 2147483648
    %v370 = vmul.f32 %v369, 1.442695
    %v371 = vpow.pop %v370
    %v372 = vadd.f32 %v371, 1.0
    %v373 = vrcp.pop %v372
    %v374 = vmul.f32 %v372, %v373
    %v375 = vsub.f32 1.0, %v374
    %v376 = vmul.f32 %v373, %v375
    %v377 = vadd.f32 %v373, %v376
    %vm378 = vweird.f32 %v372
    %vm379 = vweird.f32 %v373
    %vm380 = vmor %vm378, %vm379
    %v381 = vsel %vm380, %v373, %v377
    %v382 = vand.u32 2147483647, %v372
    %vm383 = vcmp.eq.f32.partialorder %v382, 8.507059e+37
    %v384 = vand.u32 %v372, 2147483648
    %v385 = vor.u32 1.1754944e-38, %v384
    %v386 = vsel %vm383, %v385, %v381
    %v387 = vmul.f32 1.0, %v386
    %vm388 = vcmask 57344
    %389 = vst.msk [vmem:[#allocation3] sm:$0x1] %vm388, %v387
    // Predicated region
    $region42: #{dcn_forward.1} parent=1 // pred_check
      _
    $region43: #{dcn_forward.1} parent=1 // pred_check_branch
      %391 = sbr.rel (0) target = $region45
    $region44: #{dcn_forward.1} parent=1 // pred_region
      %393 = vsyncadd [#allocation4], 0
      %s395 = sshll.u32 [#allocation3], 4
      %s396 = int_to_ptr.vmem [resolvable:$true] %s395
      %s397 = sshll.u32 %s10, 4
      %s398 = int_to_ptr.hbm [resolvable:$true] %s397
      %400 = dma.vmem_to_hbm [thread:$0]  %s396, 16, %s398, [#allocation4]
    $region45: #{dcn_forward.1} parent=1 // pred_fallthru
      _
    // Predicated region
    $region46: #{dcn_forward.1} parent=1 // pred_check
      _
    $region47: #{dcn_forward.1} parent=1 // pred_check_branch
      %402 = sbr.rel (0) target = $region49
    $region48: #{dcn_forward.1} parent=1 // pred_region
      %404 = dma.done [#allocation4], 16
    $region49: #{dcn_forward.1} parent=1 // pred_fallthru
      _
    %405 = vsyncpa [#allocation4], 1

</llo_original>
